<compile_context>
chip_gen: v5e
topology: v5e:2x2
jax: 0.10.0
libtpu: 0.0.40
codegen_flags: <defaults>
</compile_context>

<pallas_src>
import numpy as np
import jax
import jax.numpy as jnp
from jax.experimental import pallas as pl
from jax.experimental.pallas import tpu as pltpu


def _band(n: int, hw: int) -> np.ndarray:
    """Symmetric band matrix: B[i, j] = 1 if |i - j| <= hw else 0."""
    idx = np.arange(n)
    return (np.abs(idx[:, None] - idx[None, :]) <= hw).astype(np.float64)


def _make_kernel(tb: int, X: int, YZ: int, needs_cast: bool):
    def kernel(v_ref, wyz_ref, wxb_ref, o_ref):
        # v_ref: (tb, X, Y*Z) lane-dense block in its native dtype.
        # wyz_ref: (Y*Z, Y*Z) Kronecker band (bf16 for bf16 input, else f32).
        # wxb_ref: (tb*X, tb*X) block-diagonal X band with 1/win^3 folded (f32).
        # o_ref:  (tb, X, Y*Z) f32, lane-dense.
        vol = v_ref[...]
        if needs_cast:
            vol = vol.astype(jnp.float32)

        # 1) fused Y/Z window sum: 256-wide contraction, M = tb*X.
        r = jnp.dot(vol.reshape(tb * X, YZ), wyz_ref[...],
                    preferred_element_type=jnp.float32)

        # 2) X window sum (+ 1/win^3) via block-diagonal left matmul; the
        #    result is already the lane-dense output slab.
        out2d = jnp.dot(wxb_ref[...], r, preferred_element_type=jnp.float32)
        o_ref[...] = out2d.reshape(tb, X, YZ).astype(o_ref.dtype)

    return kernel


def averaging_kernel(v: jax.Array, win: int = 11,
                     target_m: int = 1024, max_tb: int = 8) -> jax.Array:
    """3-D window averaging of a (N, C, X, Y, Z) volume (layout: NCXYZ)."""
    assert win % 2 == 1, "symmetric band only matches the cumsum ref for odd win"
    N, C, X, Y, Z = v.shape
    NC, YZ = N * C, Y * Z
    hw = win // 2
    inv_vol = 1.0 / float(win) ** 3

    # TODO(synk): YZ > 2048 needs the separable fallback (see header).
    assert YZ <= 2048, "fused (Y*Z)^2 Kronecker band too large for VMEM"

    # Batch-tile size: enough volumes per grid step so the Y/Z pass gets a
    # matmul M dim of ~target_m, capped so the block-diagonal X matrix stays
    # small and so the grid has >= 2 parallel steps (both v7x TensorCores
    # busy, and the pipeline has DMA to overlap).  Must divide NC.
    tb = max(1, min(NC, max_tb, -(-target_m // (X * Y))))
    if NC >= 2:
        tb = min(tb, max(1, NC // 2))
    while NC % tb:
        tb -= 1
    grid = (NC // tb,)

    # Weight matrices: built once on the host (exact), DMA'd once (constant
    # index_map keeps them resident across grid steps).
    use_bf16 = v.dtype == jnp.bfloat16
    needs_cast = not (use_bf16 or v.dtype == jnp.float32)
    wyz_dtype = jnp.bfloat16 if use_bf16 else jnp.float32  # 0/1 exact in bf16
    wyz = jnp.asarray(np.kron(_band(Y, hw), _band(Z, hw)), dtype=wyz_dtype)
    wxb = jnp.asarray(np.kron(np.eye(tb), _band(X, hw)) * inv_vol,
                      dtype=jnp.float32)

    # Footprint-derived VMEM limit (double-buffered in/out blocks + resident
    # weights + f32 intermediates), clipped against physical capacity.
    in_bytes = tb * X * YZ * jnp.dtype(v.dtype).itemsize
    out_bytes = tb * X * YZ * 4
    w_bytes = YZ * YZ * jnp.dtype(wyz_dtype).itemsize + (tb * X) ** 2 * 4
    tmp_bytes = 4 * tb * X * YZ * 4
    footprint = 2 * in_bytes + 2 * out_bytes + 2 * w_bytes + tmp_bytes
    vmem_limit = int(min(max(2 * footprint, 16 << 20), 96 << 20))
    try:
        cap = pltpu.get_tpu_info().vmem_capacity_bytes
        vmem_limit = min(vmem_limit, int(cap * 3 // 4))
    except Exception:  # pragma: no cover - conservative fallback
        pass

    out3 = pl.pallas_call(
        _make_kernel(tb, X, YZ, needs_cast),
        out_shape=jax.ShapeDtypeStruct((NC, X, YZ), jnp.float32),
        grid_spec=pltpu.PrefetchScalarGridSpec(
            num_scalar_prefetch=0,
            grid=grid,
            in_specs=[
                pl.BlockSpec((tb, X, YZ), lambda b: (b, 0, 0)),        # volume
                pl.BlockSpec((YZ, YZ), lambda b: (0, 0)),              # Wyz
                pl.BlockSpec((tb * X, tb * X), lambda b: (0, 0)),      # Wx blk
            ],
            out_specs=pl.BlockSpec((tb, X, YZ), lambda b: (b, 0, 0)),
        ),
        compiler_params=pltpu.CompilerParams(
            dimension_semantics=("parallel",),
            vmem_limit_bytes=vmem_limit),
    )(v.reshape(NC, X, YZ), wyz, wxb)    # lane-dense native-dtype input view

    return out3.reshape(N, C, X, Y, Z)


def _reference_numpy(v: np.ndarray, win: int = 11) -> np.ndarray:
    """Pure-numpy replica of the PyTorch cumsum implementation (float64)."""
    v = np.asarray(v, dtype=np.float64)
    hw = win // 2
    vp = np.pad(v, ((0, 0), (0, 0), (hw + 1, hw), (hw + 1, hw), (hw + 1, hw)))
    cs = np.cumsum(np.cumsum(np.cumsum(vp, axis=2), axis=3), axis=4)
    x, y, z = v.shape[2:]
    S = cs
    out = (S[:, :, win:, win:, win:] - S[:, :, win:, win:, :z]
           - S[:, :, win:, :y, win:] - S[:, :, :x, win:, win:]
           + S[:, :, win:, :y, :z] + S[:, :, :x, win:, :z]
           + S[:, :, :x, :y, win:] - S[:, :, :x, :y, :z]) / win ** 3
    return out.astype(np.float32)


if __name__ == "__main__":
    key = jax.random.PRNGKey(0)
    N, C, X, Y, Z = 2, 2, 16, 16, 16          # small synthetic volume (NCXYZ)
    v = jax.random.uniform(key, (N, C, X, Y, Z), dtype=jnp.float32)

    # f32 path
    out = jax.block_until_ready(averaging_kernel(v, win=11))
    ref = _reference_numpy(np.asarray(v), win=11)
    np.testing.assert_allclose(np.asarray(out), ref, rtol=1e-4, atol=1e-4)

    # bf16 path (native-dtype MXU feed, f32 accumulation)
    v_bf16 = v.astype(jnp.bfloat16)
    out_bf16 = jax.block_until_ready(averaging_kernel(v_bf16, win=11))
    ref_bf16 = _reference_numpy(np.asarray(v_bf16.astype(jnp.float32)), win=11)
    np.testing.assert_allclose(np.asarray(out_bf16), ref_bf16,
                               rtol=1e-3, atol=1e-3)

    print("KERNEL_OK")
</pallas_src>

<mosaic_0001>
module attributes {stable_mosaic.version = 11 : i64} {
  func.func @kernel(%arg0: i32, %arg1: memref<2x16x256xf32, #tpu.memory_space<vmem>>, %arg2: memref<256x256xf32, #tpu.memory_space<vmem>>, %arg3: memref<32x32xf32, #tpu.memory_space<vmem>>, %arg4: memref<2x16x256xf32, #tpu.memory_space<vmem>>) attributes {dimension_semantics = [#tpu.dimension_semantics<parallel>], iteration_bounds = array<i64: 2>, scalar_prefetch = 0 : i64, scratch_operands = 0 : i64, tpu.core_type = #tpu.core_type<tc>, window_params = [{transform_indices = @transform_0, window_bounds = array<i64: 2, 16, 256>}, {pipeline_mode = #tpu.pipeline_mode<synchronous>, transform_indices = @transform_1, window_bounds = array<i64: 256, 256>}, {pipeline_mode = #tpu.pipeline_mode<synchronous>, transform_indices = @transform_2, window_bounds = array<i64: 32, 32>}, {transform_indices = @transform_3, window_bounds = array<i64: 2, 16, 256>}]} {
    %c0 = arith.constant 0 : index
    %c0_0 = arith.constant 0 : index
    %c0_1 = arith.constant 0 : index
    %0 = vector.load %arg1[%c0, %c0_0, %c0_1] : memref<2x16x256xf32, #tpu.memory_space<vmem>>, vector<2x16x256xf32>
    %1 = vector.shape_cast %0 : vector<2x16x256xf32> to vector<32x256xf32>
    %c0_2 = arith.constant 0 : index
    %c0_3 = arith.constant 0 : index
    %2 = vector.load %arg2[%c0_2, %c0_3] : memref<256x256xf32, #tpu.memory_space<vmem>>, vector<256x256xf32>
    %cst = arith.constant dense<0.000000e+00> : vector<32x256xf32>
    %3 = tpu.matmul %1, %2, %cst {dimension_numbers = #tpu.dot_dimension_numbers<[1], [0], [0], [1], [0, 0, 1, 1], [], []>} : vector<32x256xf32>, vector<256x256xf32>, vector<32x256xf32> -> vector<32x256xf32>
    %c0_4 = arith.constant 0 : index
    %c0_5 = arith.constant 0 : index
    %4 = vector.load %arg3[%c0_4, %c0_5] : memref<32x32xf32, #tpu.memory_space<vmem>>, vector<32x32xf32>
    %cst_6 = arith.constant dense<0.000000e+00> : vector<32x256xf32>
    %5 = tpu.matmul %4, %3, %cst_6 {dimension_numbers = #tpu.dot_dimension_numbers<[1], [0], [0], [1], [0, 0, 1, 1], [], []>} : vector<32x32xf32>, vector<32x256xf32>, vector<32x256xf32> -> vector<32x256xf32>
    %6 = vector.shape_cast %5 : vector<32x256xf32> to vector<2x16x256xf32>
    %c0_7 = arith.constant 0 : index
    %c0_8 = arith.constant 0 : index
    %c0_9 = arith.constant 0 : index
    %7 = vector.load %arg4[%c0_7, %c0_8, %c0_9] : memref<2x16x256xf32, #tpu.memory_space<vmem>>, vector<2x16x256xf32>
    tpu.vector_store %arg4[%c0_7, %c0_8, %c0_9], %6 {strides = array<i32>} : memref<2x16x256xf32, #tpu.memory_space<vmem>>, vector<2x16x256xf32>,
    return
  }
  func.func @transform_0(%arg0: i32) -> (i32, i32, i32) {
    %c0_i32 = arith.constant 0 : i32
    %c0_i32_0 = arith.constant 0 : i32
    %c0_i32_1 = arith.constant 0 : i32
    return %arg0, %c0_i32, %c0_i32_0 : i32, i32, i32
  }
  func.func @transform_1(%arg0: i32) -> (i32, i32) {
    %c0_i32 = arith.constant 0 : i32
    %c0_i32_0 = arith.constant 0 : i32
    %c0_i32_1 = arith.constant 0 : i32
    return %c0_i32, %c0_i32_0 : i32, i32
  }
  func.func @transform_2(%arg0: i32) -> (i32, i32) {
    %c0_i32 = arith.constant 0 : i32
    %c0_i32_0 = arith.constant 0 : i32
    %c0_i32_1 = arith.constant 0 : i32
    return %c0_i32, %c0_i32_0 : i32, i32
  }
  func.func @transform_3(%arg0: i32) -> (i32, i32, i32) {
    %c0_i32 = arith.constant 0 : i32
    %c0_i32_0 = arith.constant 0 : i32
    %c0_i32_1 = arith.constant 0 : i32
    return %arg0, %c0_i32, %c0_i32_0 : i32, i32, i32
  }
}

</mosaic_0001>

<llo_original>
// kernel: tpu_custom_call.1
$region0: #{tpu_custom_call.1}
  #allocation0 [shape = 'u32[]', space=smem, size = 0x4, offset = 0x4, fixed_abs, tag = 'smem constant byte address 0x4 - core index']
  #allocation1 [shape = 'u32[72,128]{1,0:T(1,128)}', space=vmem, size = 0x9000, scoped, tag = 'internal scratch']
  %s0 = inlined_call_operand.hbm [shape: f32[4,16,256], index: 0, kind: input, shape index: {}]
  %s1 = inlined_call_operand.hbm [shape: f32[256,256], index: 1, kind: input, shape index: {}]
  %s2 = inlined_call_operand.hbm [shape: f32[32,32], index: 2, kind: input, shape index: {}]
  %s3 = inlined_call_operand.hbm [shape: f32[4,16,256], index: 3, kind: output, shape index: {}]
  %s4 = sld [smem:[#allocation0]]
  $region57: #{tpu_custom_call.1} parent=0
    _
  %s6 = ssub.s32 1, %s4
  %s7 = scalar_select 0, %s6, %s4
  $region1: #{tpu_custom_call.1} parent=0
    #allocation2 [shape = 'u8[65536]{0}', space=vmem, size = 0x10000, scoped, tag = 'input window, operand 0']
    #allocation3 [shape = 's32[2]{0}', space=sflag, size = 0x8, scoped, tag = 'scoped memory for tpu_custom_call.1']
    #allocation4 [shape = 's32[2]{0}', space=sflag, size = 0x8, scoped, tag = 'scoped memory for tpu_custom_call.1']
    #allocation5 [shape = 'u8[262144]{0}', space=vmem, size = 0x40000, scoped, tag = 'input window, operand 1, single buffered']
    #allocation6 [shape = 's32[1]{0}', space=sflag, size = 0x4, scoped, tag = 'scoped memory for tpu_custom_call.1']
    #allocation7 [shape = 'u8[16384]{0}', space=vmem, size = 0x4000, scoped, tag = 'input window, operand 2, single buffered']
    #allocation8 [shape = 'u8[65536]{0}', space=vmem, size = 0x10000, scoped, tag = 'output window, operand 0']
    %8 = vsyncpa [#allocation3], 0
    %s9 = scalar_lea.sflag [#allocation3], 1
    %10 = vsyncpa %s9, 0
    %11 = vsyncpa [#allocation6], 0
    %12 = vsyncpa [#allocation4], 0
    %s13 = scalar_lea.sflag [#allocation4], 1
    %14 = vsyncpa %s13, 0
    loop: start=0, step=1, limit=4
    $region2: #{tpu_custom_call.1} parent=1 // loop_pre_header
      _
    $region3: #{tpu_custom_call.1} parent=1 // loop_header
      %s16 = sphi 0, %s20
      %p17 = scmp.ge.s32.totalorder %s16, 4
      %s26 = sphi 0, %s28
      %s29 = sphi 0, %s26
      %s30 = sphi 0, %s29
      %s46 = sphi 0, %s30
      %s50 = sphi 0, %s50
      %s52 = sphi 0, %s50
      %s53 = sphi 0, %s52
      %s67 = sphi 0, %s53
      %s71 = sphi 0, %s71
      %s73 = sphi 0, %s71
      %s74 = sphi 0, %s73
      %s88 = sphi 0, %s74
      %s94 = sphi 0, %s96
      %s97 = sphi 0, %s94
      %s98 = sphi 0, %s97
      %s114 = sphi 0, %s98
    $region4: #{tpu_custom_call.1} parent=1 // loop_header_branch
      %19 = sbr.rel (%p17) target = $region8
    $region5: #{tpu_custom_call.1} parent=1 // loop_body
      %s21 = ssub.s32 %s16, 1
      %s22 = ssub.s32 %s16, 2
      %s23 = sadd.s32 %s16, 1
      %s24 = ssub.s32 %s16, %s23
      %p25 = scmp.eq.s32.totalorder %s24, 0
      %s27 = sadd.s32 %s26, 1
      %s28 = scalar_select %p25, %s26, %s27
      %p31 = pneg %p25
      %p32 = scmp.eq.s32.totalorder %s16, 1
      %p33 = por %p31, %p32
      %p34 = scmp.ne.s32.totalorder %s26, %s29
      %p35 = scmp.eq.s32.totalorder %s16, 0
      %p36 = por %p34, %p35
      %p37 = scmp.ne.s32.totalorder %s26, %s29
      %p38 = scmp.eq.s32.totalorder %s21, 1
      %p39 = por %p37, %p38
      %p40 = scmp.ne.s32.totalorder %s29, %s30
      %p41 = scmp.eq.s32.totalorder %s21, 0
      %p42 = por %p40, %p41
      %p43 = scmp.ne.s32.totalorder %s29, %s30
      %p44 = scmp.eq.s32.totalorder %s22, 1
      %p45 = por %p43, %p44
      %p47 = scmp.ne.s32.totalorder %s30, %s46
      %p48 = scmp.eq.s32.totalorder %s22, 0
      %p49 = por %p47, %p48
      %s51 = sadd.s32 %s50, 1
      %p54 = scmp.eq.s32.totalorder %s16, 1
      %p55 = scmp.ne.s32.totalorder %s50, %s52
      %p56 = scmp.eq.s32.totalorder %s16, 0
      %p57 = por %p55, %p56
      %p58 = scmp.ne.s32.totalorder %s50, %s52
      %p59 = scmp.eq.s32.totalorder %s21, 1
      %p60 = por %p58, %p59
      %p61 = scmp.ne.s32.totalorder %s52, %s53
      %p62 = scmp.eq.s32.totalorder %s21, 0
      %p63 = por %p61, %p62
      %p64 = scmp.ne.s32.totalorder %s52, %s53
      %p65 = scmp.eq.s32.totalorder %s22, 1
      %p66 = por %p64, %p65
      %p68 = scmp.ne.s32.totalorder %s53, %s67
      %p69 = scmp.eq.s32.totalorder %s22, 0
      %p70 = por %p68, %p69
      %s72 = sadd.s32 %s71, 1
      %p75 = scmp.eq.s32.totalorder %s16, 1
      %p76 = scmp.ne.s32.totalorder %s71, %s73
      %p77 = scmp.eq.s32.totalorder %s16, 0
      %p78 = por %p76, %p77
      %p79 = scmp.ne.s32.totalorder %s71, %s73
      %p80 = scmp.eq.s32.totalorder %s21, 1
      %p81 = por %p79, %p80
      %p82 = scmp.ne.s32.totalorder %s73, %s74
      %p83 = scmp.eq.s32.totalorder %s21, 0
      %p84 = por %p82, %p83
      %p85 = scmp.ne.s32.totalorder %s73, %s74
      %p86 = scmp.eq.s32.totalorder %s22, 1
      %p87 = por %p85, %p86
      %p89 = scmp.ne.s32.totalorder %s74, %s88
      %p90 = scmp.eq.s32.totalorder %s22, 0
      %p91 = por %p89, %p90
      %s92 = ssub.s32 %s16, %s23
      %p93 = scmp.eq.s32.totalorder %s92, 0
      %s95 = sadd.s32 %s94, 1
      %s96 = scalar_select %p93, %s94, %s95
      %p99 = pneg %p93
      %p100 = scmp.eq.s32.totalorder %s16, 1
      %p101 = por %p99, %p100
      %p102 = scmp.ne.s32.totalorder %s94, %s97
      %p103 = scmp.eq.s32.totalorder %s16, 0
      %p104 = por %p102, %p103
      %p105 = scmp.ne.s32.totalorder %s94, %s97
      %p106 = scmp.eq.s32.totalorder %s21, 1
      %p107 = por %p105, %p106
      %p108 = scmp.ne.s32.totalorder %s97, %s98
      %p109 = scmp.eq.s32.totalorder %s21, 0
      %p110 = por %p108, %p109
      %p111 = scmp.ne.s32.totalorder %s97, %s98
      %p112 = scmp.eq.s32.totalorder %s22, 1
      %p113 = por %p111, %p112
      %p115 = scmp.ne.s32.totalorder %s98, %s114
      %p116 = scmp.eq.s32.totalorder %s22, 0
      %p117 = por %p115, %p116
      %p118 = scmp.le.s32.totalorder 1, %s16
      %p119 = scmp.lt.s32.totalorder %s16, 3
      %p120 = pnand %p118, %p119
      %p121 = pneg %p120
      // Predicated region
      $region9: #{tpu_custom_call.1} parent=5 // pred_check
        _
      $region10: #{tpu_custom_call.1} parent=5 // pred_check_branch
        %123 = sbr.rel (%p120) target = $region12
      $region11: #{tpu_custom_call.1} parent=5 // pred_region
        %s124 = ssub.s32 %s16, 1
        // Predicated region
        $region13: #{tpu_custom_call.1} parent=11 // pred_check
          %p125 = pneg %p63
        $region14: #{tpu_custom_call.1} parent=11 // pred_check_branch
          %127 = sbr.rel (%p125) target = $region16
        $region15: #{tpu_custom_call.1} parent=11 // pred_region
          %129 = vsyncadd [#allocation6], 0
          %s130 = sshll.u32 %s1, 4
          %s131 = int_to_ptr.hbm [resolvable:$true] %s130
          %s132 = sshll.u32 [#allocation5], 4
          %s133 = int_to_ptr.vmem [resolvable:$true] %s132
          %138 = dma.hbm_to_vmem [thread:$0]  %s131, 8192, %s133, [#allocation6], 256, 256, 16
        $region16: #{tpu_custom_call.1} parent=11 // pred_fallthru
          _
        // Predicated region
        $region17: #{tpu_custom_call.1} parent=11 // pred_check
          %p139 = pneg %p84
        $region18: #{tpu_custom_call.1} parent=11 // pred_check_branch
          %141 = sbr.rel (%p139) target = $region20
        $region19: #{tpu_custom_call.1} parent=11 // pred_region
          %143 = vsyncadd [#allocation6], 0
          %s144 = sshll.u32 %s2, 4
          %s145 = int_to_ptr.hbm [resolvable:$true] %s144
          %s146 = sshll.u32 [#allocation7], 4
          %s147 = int_to_ptr.vmem [resolvable:$true] %s146
          %152 = dma.hbm_to_vmem [thread:$0]  %s145, 512, %s147, [#allocation6], 128, 128, 8
        $region20: #{tpu_custom_call.1} parent=11 // pred_fallthru
          _
      $region12: #{tpu_custom_call.1} parent=5 // pred_fallthru
        _
      %p153 = scmp.lt.s32.totalorder %s16, 2
      // Predicated region
      $region21: #{tpu_custom_call.1} parent=5 // pred_check
        %p154 = pneg %p153
      $region22: #{tpu_custom_call.1} parent=5 // pred_check_branch
        %156 = sbr.rel (%p154) target = $region24
      $region23: #{tpu_custom_call.1} parent=5 // pred_region
        // Predicated region
        $region25: #{tpu_custom_call.1} parent=23 // pred_check
          %p157 = pneg %p36
        $region26: #{tpu_custom_call.1} parent=23 // pred_check_branch
          %159 = sbr.rel (%p157) target = $region28
        $region27: #{tpu_custom_call.1} parent=23 // pred_region
          %s160 = sand.u32 %s26, 1
          %s161 = scalar_lea.sflag [#allocation3], %s160
          %s162 = sand.u32 %s26, 1
          %s163 = smul.addr %s162, 64
          %s164 = scalar_lea.vmem [#allocation2], %s163
          %s165 = smul.u32 2, %s16
          %167 = vsyncadd %s161, 0
          %s168 = smul.addr %s165, 4
          %s169 = smul.addr %s168, 8
          %s170 = scalar_lea.hbm %s0, %s169
          %s171 = sshll.u32 %s170, 4
          %s172 = int_to_ptr.hbm [resolvable:$true] %s171
          %s173 = sshll.u32 %s164, 4
          %s174 = int_to_ptr.vmem [resolvable:$true] %s173
          %179 = dma.hbm_to_vmem [thread:$0]  %s172, 1024, %s174, %s161, 256, 256, 16
        $region28: #{tpu_custom_call.1} parent=23 // pred_fallthru
          _
      $region24: #{tpu_custom_call.1} parent=5 // pred_fallthru
        _
      %p180 = scmp.le.s32.totalorder 1, %s16
      %p181 = scmp.lt.s32.totalorder %s16, 3
      %p182 = pnand %p180, %p181
      %p183 = pneg %p182
      // Predicated region
      $region29: #{tpu_custom_call.1} parent=5 // pred_check
        _
      $region30: #{tpu_custom_call.1} parent=5 // pred_check_branch
        %185 = sbr.rel (%p182) target = $region32
      $region31: #{tpu_custom_call.1} parent=5 // pred_region
        %s186 = ssub.s32 %s16, 1
        %s187 = sand.u32 %s29, 1
        %s188 = scalar_lea.sflag [#allocation3], %s187
        %s189 = sand.u32 %s29, 1
        %s190 = smul.addr %s189, 64
        %s191 = scalar_lea.vmem [#allocation2], %s190
        // Predicated region
        $region33: #{tpu_custom_call.1} parent=31 // pred_check
          %p192 = pneg %p42
        $region34: #{tpu_custom_call.1} parent=31 // pred_check_branch
          %194 = sbr.rel (%p192) target = $region36
        $region35: #{tpu_custom_call.1} parent=31 // pred_region
          %196 = dma.done %s188, 1024
        $region36: #{tpu_custom_call.1} parent=31 // pred_fallthru
          _
        // Predicated region
        $region37: #{tpu_custom_call.1} parent=31 // pred_check
          %p197 = pneg %p63
        $region38: #{tpu_custom_call.1} parent=31 // pred_check_branch
          %199 = sbr.rel (%p197) target = $region40
        $region39: #{tpu_custom_call.1} parent=31 // pred_region
          %201 = dma.done [#allocation6], 8192
        $region40: #{tpu_custom_call.1} parent=31 // pred_fallthru
          _
        // Predicated region
        $region41: #{tpu_custom_call.1} parent=31 // pred_check
          %p202 = pneg %p84
        $region42: #{tpu_custom_call.1} parent=31 // pred_check_branch
          %204 = sbr.rel (%p202) target = $region44
        $region43: #{tpu_custom_call.1} parent=31 // pred_region
          %206 = dma.done [#allocation6], 512
        $region44: #{tpu_custom_call.1} parent=31 // pred_fallthru
          _
        %s207 = sand.u32 %s29, 1
        %s208 = scalar_lea.sflag [#allocation3], %s207
        %s209 = sand.u32 %s29, 1
        %s210 = smul.addr %s209, 64
        %s211 = scalar_lea.vmem [#allocation2], %s210
        %p212 = pneg %p42
        %p213 = pneg %p39
        %p214 = pneg %p63
        %p215 = pneg %p60
        %p216 = pneg %p84
        %p217 = pneg %p81
        %p218 = pneg %p110
        %p219 = pneg %p107
        %s220 = sand.u32 %s97, 1
        %s221 = scalar_lea.sflag [#allocation4], %s220
        %s222 = sand.u32 %s97, 1
        %s223 = smul.addr %s222, 64
        %s224 = scalar_lea.vmem [#allocation8], %s223
        %s225 = smul.u32 2, %s21
        %s226 = smul.u32 2, %s21
        %v227 = vld [vmem:[%s191] sm:$0xff]
        %v228 = vld [vmem:[%s191 + $0x8] sm:$0xff]
        %v229 = vld [vmem:[%s191 + $0x10] sm:$0xff]
        %v230 = vld [vmem:[%s191 + $0x18] sm:$0xff]
        %v231 = vld [vmem:[%s191 + $0x20] sm:$0xff]
        %v232 = vld [vmem:[%s191 + $0x28] sm:$0xff]
        %v233 = vld [vmem:[%s191 + $0x30] sm:$0xff]
        %v234 = vld [vmem:[%s191 + $0x38] sm:$0xff]
        %v235 = vld [vmem:[#allocation5] sm:$0xff]
        %v236 = vld [vmem:[#allocation5 + $0x8] sm:$0xff]
        %v237 = vld [vmem:[#allocation5 + $0x10] sm:$0xff]
        %v238 = vld [vmem:[#allocation5 + $0x18] sm:$0xff]
        %v239 = vld [vmem:[#allocation5 + $0x20] sm:$0xff]
        %v240 = vld [vmem:[#allocation5 + $0x28] sm:$0xff]
        %v241 = vld [vmem:[#allocation5 + $0x30] sm:$0xff]
        %v242 = vld [vmem:[#allocation5 + $0x38] sm:$0xff]
        %v243 = vld [vmem:[#allocation5 + $0x40] sm:$0xff]
        %v244 = vld [vmem:[#allocation5 + $0x48] sm:$0xff]
        %v245 = vld [vmem:[#allocation5 + $0x50] sm:$0xff]
        %v246 = vld [vmem:[#allocation5 + $0x58] sm:$0xff]
        %v247 = vld [vmem:[#allocation5 + $0x60] sm:$0xff]
        %v248 = vld [vmem:[#allocation5 + $0x68] sm:$0xff]
        %v249 = vld [vmem:[#allocation5 + $0x70] sm:$0xff]
        %v250 = vld [vmem:[#allocation5 + $0x78] sm:$0xff]
        %v251 = vld [vmem:[#allocation5 + $0x80] sm:$0xff]
        %v252 = vld [vmem:[#allocation5 + $0x88] sm:$0xff]
        %v253 = vld [vmem:[#allocation5 + $0x90] sm:$0xff]
        %v254 = vld [vmem:[#allocation5 + $0x98] sm:$0xff]
        %v255 = vld [vmem:[#allocation5 + $0xa0] sm:$0xff]
        %v256 = vld [vmem:[#allocation5 + $0xa8] sm:$0xff]
        %v257 = vld [vmem:[#allocation5 + $0xb0] sm:$0xff]
        %v258 = vld [vmem:[#allocation5 + $0xb8] sm:$0xff]
        %v259 = vld [vmem:[#allocation5 + $0xc0] sm:$0xff]
        %v260 = vld [vmem:[#allocation5 + $0xc8] sm:$0xff]
        %v261 = vld [vmem:[#allocation5 + $0xd0] sm:$0xff]
        %v262 = vld [vmem:[#allocation5 + $0xd8] sm:$0xff]
        %v263 = vld [vmem:[#allocation5 + $0xe0] sm:$0xff]
        %v264 = vld [vmem:[#allocation5 + $0xe8] sm:$0xff]
        %v265 = vld [vmem:[#allocation5 + $0xf0] sm:$0xff]
        %v266 = vld [vmem:[#allocation5 + $0xf8] sm:$0xff]
        %v267 = vld [vmem:[#allocation5 + $0x100] sm:$0xff]
        %v268 = vld [vmem:[#allocation5 + $0x108] sm:$0xff]
        %v269 = vld [vmem:[#allocation5 + $0x110] sm:$0xff]
        %v270 = vld [vmem:[#allocation5 + $0x118] sm:$0xff]
        %v271 = vld [vmem:[#allocation5 + $0x120] sm:$0xff]
        %v272 = vld [vmem:[#allocation5 + $0x128] sm:$0xff]
        %v273 = vld [vmem:[#allocation5 + $0x130] sm:$0xff]
        %v274 = vld [vmem:[#allocation5 + $0x138] sm:$0xff]
        %v275 = vld [vmem:[#allocation5 + $0x140] sm:$0xff]
        %v276 = vld [vmem:[#allocation5 + $0x148] sm:$0xff]
        %v277 = vld [vmem:[#allocation5 + $0x150] sm:$0xff]
        %v278 = vld [vmem:[#allocation5 + $0x158] sm:$0xff]
        %v279 = vld [vmem:[#allocation5 + $0x160] sm:$0xff]
        %v280 = vld [vmem:[#allocation5 + $0x168] sm:$0xff]
        %v281 = vld [vmem:[#allocation5 + $0x170] sm:$0xff]
        %v282 = vld [vmem:[#allocation5 + $0x178] sm:$0xff]
        %v283 = vld [vmem:[#allocation5 + $0x180] sm:$0xff]
        %v284 = vld [vmem:[#allocation5 + $0x188] sm:$0xff]
        %v285 = vld [vmem:[#allocation5 + $0x190] sm:$0xff]
        %v286 = vld [vmem:[#allocation5 + $0x198] sm:$0xff]
        %v287 = vld [vmem:[#allocation5 + $0x1a0] sm:$0xff]
        %v288 = vld [vmem:[#allocation5 + $0x1a8] sm:$0xff]
        %v289 = vld [vmem:[#allocation5 + $0x1b0] sm:$0xff]
        %v290 = vld [vmem:[#allocation5 + $0x1b8] sm:$0xff]
        %v291 = vld [vmem:[#allocation5 + $0x1c0] sm:$0xff]
        %v292 = vld [vmem:[#allocation5 + $0x1c8] sm:$0xff]
        %v293 = vld [vmem:[#allocation5 + $0x1d0] sm:$0xff]
        %v294 = vld [vmem:[#allocation5 + $0x1d8] sm:$0xff]
        %v295 = vld [vmem:[#allocation5 + $0x1e0] sm:$0xff]
        %v296 = vld [vmem:[#allocation5 + $0x1e8] sm:$0xff]
        %v297 = vld [vmem:[#allocation5 + $0x1f0] sm:$0xff]
        %v298 = vld [vmem:[#allocation5 + $0x1f8] sm:$0xff]
        %299 = vmatpush.msra.mxu0 %v265
        %300 = vmatpush.msra.mxu0 %v263
        %301 = vmatpush.msra.mxu0 %v261
        %302 = vmatpush.msra.mxu0 %v259
        %303 = vmatpush.msra.mxu0 %v257
        %304 = vmatpush.msra.mxu0 %v255
        %305 = vmatpush.msra.mxu0 %v253
        %306 = vmatpush.msra.mxu0 %v251
        %307 = vmatpush.msra.mxu0 %v249
        %308 = vmatpush.msra.mxu0 %v247
        %309 = vmatpush.msra.mxu0 %v245
        %310 = vmatpush.msra.mxu0 %v243
        %311 = vmatpush.msra.mxu0 %v241
        %312 = vmatpush.msra.mxu0 %v239
        %313 = vmatpush.msra.mxu0 %v237
        %314 = vmatpush.msra.mxu0 %v235
        %315 = vmatmul.f32.gmra.mxu0 %v227
        %v316 = vpop.f32.mrf.mxu0
        %v317 = vadd.f32 0.0, %v316
        %318 = vmatmul.f32.gmra.mxu0 %v229
        %v319 = vpop.f32.mrf.mxu0
        %v320 = vadd.f32 0.0, %v319
        %321 = vmatmul.f32.gmra.mxu0 %v231
        %v322 = vpop.f32.mrf.mxu0
        %v323 = vadd.f32 0.0, %v322
        %324 = vmatmul.f32.gmra.mxu0 %v233
        %v325 = vpop.f32.mrf.mxu0
        %v326 = vadd.f32 0.0, %v325
        %327 = vdwg.mxu0
        %328 = vmatpush.msra.mxu0 %v297
        %329 = vmatpush.msra.mxu0 %v295
        %330 = vmatpush.msra.mxu0 %v293
        %331 = vmatpush.msra.mxu0 %v291
        %332 = vmatpush.msra.mxu0 %v289
        %333 = vmatpush.msra.mxu0 %v287
        %334 = vmatpush.msra.mxu0 %v285
        %335 = vmatpush.msra.mxu0 %v283
        %336 = vmatpush.msra.mxu0 %v281
        %337 = vmatpush.msra.mxu0 %v279
        %338 = vmatpush.msra.mxu0 %v277
        %339 = vmatpush.msra.mxu0 %v275
        %340 = vmatpush.msra.mxu0 %v273
        %341 = vmatpush.msra.mxu0 %v271
        %342 = vmatpush.msra.mxu0 %v269
        %343 = vmatpush.msra.mxu0 %v267
        %344 = vmatmul.f32.gmra.mxu0 %v228
        %v345 = vpop.f32.mrf.mxu0
        %v346 = vadd.f32 %v317, %v345
        %347 = vmatmul.f32.gmra.mxu0 %v230
        %v348 = vpop.f32.mrf.mxu0
        %v349 = vadd.f32 %v320, %v348
        %350 = vmatmul.f32.gmra.mxu0 %v232
        %v351 = vpop.f32.mrf.mxu0
        %v352 = vadd.f32 %v323, %v351
        %353 = vmatmul.f32.gmra.mxu0 %v234
        %v354 = vpop.f32.mrf.mxu0
        %v355 = vadd.f32 %v326, %v354
        %356 = vdwg.mxu0
        %357 = vmatpush.msra.mxu0 %v266
        %358 = vmatpush.msra.mxu0 %v264
        %359 = vmatpush.msra.mxu0 %v262
        %360 = vmatpush.msra.mxu0 %v260
        %361 = vmatpush.msra.mxu0 %v258
        %362 = vmatpush.msra.mxu0 %v256
        %363 = vmatpush.msra.mxu0 %v254
        %364 = vmatpush.msra.mxu0 %v252
        %365 = vmatpush.msra.mxu0 %v250
        %366 = vmatpush.msra.mxu0 %v248
        %367 = vmatpush.msra.mxu0 %v246
        %368 = vmatpush.msra.mxu0 %v244
        %369 = vmatpush.msra.mxu0 %v242
        %370 = vmatpush.msra.mxu0 %v240
        %371 = vmatpush.msra.mxu0 %v238
        %372 = vmatpush.msra.mxu0 %v236
        %373 = vmatmul.f32.gmra.mxu0 %v227
        %v374 = vpop.f32.mrf.mxu0
        %v375 = vadd.f32 0.0, %v374
        %376 = vmatmul.f32.gmra.mxu0 %v229
        %v377 = vpop.f32.mrf.mxu0
        %v378 = vadd.f32 0.0, %v377
        %379 = vmatmul.f32.gmra.mxu0 %v231
        %v380 = vpop.f32.mrf.mxu0
        %v381 = vadd.f32 0.0, %v380
        %382 = vmatmul.f32.gmra.mxu0 %v233
        %v383 = vpop.f32.mrf.mxu0
        %v384 = vadd.f32 0.0, %v383
        %385 = vdwg.mxu0
        %386 = vmatpush.msra.mxu0 %v298
        %387 = vmatpush.msra.mxu0 %v296
        %388 = vmatpush.msra.mxu0 %v294
        %389 = vmatpush.msra.mxu0 %v292
        %390 = vmatpush.msra.mxu0 %v290
        %391 = vmatpush.msra.mxu0 %v288
        %392 = vmatpush.msra.mxu0 %v286
        %393 = vmatpush.msra.mxu0 %v284
        %394 = vmatpush.msra.mxu0 %v282
        %395 = vmatpush.msra.mxu0 %v280
        %396 = vmatpush.msra.mxu0 %v278
        %397 = vmatpush.msra.mxu0 %v276
        %398 = vmatpush.msra.mxu0 %v274
        %399 = vmatpush.msra.mxu0 %v272
        %400 = vmatpush.msra.mxu0 %v270
        %401 = vmatpush.msra.mxu0 %v268
        %402 = vmatmul.f32.gmra.mxu0 %v228
        %v403 = vpop.f32.mrf.mxu0
        %v404 = vadd.f32 %v375, %v403
        %405 = vmatmul.f32.gmra.mxu0 %v230
        %v406 = vpop.f32.mrf.mxu0
        %v407 = vadd.f32 %v378, %v406
        %408 = vmatmul.f32.gmra.mxu0 %v232
        %v409 = vpop.f32.mrf.mxu0
        %v410 = vadd.f32 %v381, %v409
        %411 = vmatmul.f32.gmra.mxu0 %v234
        %v412 = vpop.f32.mrf.mxu0
        %v413 = vadd.f32 %v384, %v412
        %414 = vdwg.mxu0
        %v415 = vld [vmem:[#allocation7] sm:$0xff]
        %v416 = vld [vmem:[#allocation7 + $0x8] sm:$0xff]
        %v417 = vld [vmem:[#allocation7 + $0x10] sm:$0xff]
        %v418 = vld [vmem:[#allocation7 + $0x18] sm:$0xff]
        %vm419 = vcmask 261120
        %v421 = vsel %vm419, %v415, 0
        %v424 = vsel %vm419, %v416, 0
        %v427 = vsel %vm419, %v417, 0
        %v430 = vsel %vm419, %v418, 0
        %432 = vmatpush.msra.mxu0 0.0
        %433 = vmatpush.msra.mxu0 0.0
        %434 = vmatpush.msra.mxu0 0.0
        %435 = vmatpush.msra.mxu0 0.0
        %436 = vmatpush.msra.mxu0 0.0
        %437 = vmatpush.msra.mxu0 0.0
        %438 = vmatpush.msra.mxu0 0.0
        %439 = vmatpush.msra.mxu0 0.0
        %440 = vmatpush.msra.mxu0 0.0
        %441 = vmatpush.msra.mxu0 0.0
        %442 = vmatpush.msra.mxu0 0.0
        %443 = vmatpush.msra.mxu0 0.0
        %444 = vmatpush.msra.mxu0 %v355
        %445 = vmatpush.msra.mxu0 %v352
        %446 = vmatpush.msra.mxu0 %v349
        %447 = vmatpush.msra.mxu0 %v346
        %448 = vmatmul.f32.gmra.mxu0 %v421
        %v449 = vpop.f32.mrf.mxu0
        %v450 = vadd.f32 0.0, %v449
        %451 = vmatmul.f32.gmra.mxu0 %v424
        %v452 = vpop.f32.mrf.mxu0
        %v453 = vadd.f32 0.0, %v452
        %454 = vmatmul.f32.gmra.mxu0 %v427
        %v455 = vpop.f32.mrf.mxu0
        %v456 = vadd.f32 0.0, %v455
        %457 = vmatmul.f32.gmra.mxu0 %v430
        %v458 = vpop.f32.mrf.mxu0
        %v459 = vadd.f32 0.0, %v458
        %460 = vdwg.mxu0
        %461 = vmatpush.msra.mxu0 0.0
        %462 = vmatpush.msra.mxu0 0.0
        %463 = vmatpush.msra.mxu0 0.0
        %464 = vmatpush.msra.mxu0 0.0
        %465 = vmatpush.msra.mxu0 0.0
        %466 = vmatpush.msra.mxu0 0.0
        %467 = vmatpush.msra.mxu0 0.0
        %468 = vmatpush.msra.mxu0 0.0
        %469 = vmatpush.msra.mxu0 0.0
        %470 = vmatpush.msra.mxu0 0.0
        %471 = vmatpush.msra.mxu0 0.0
        %472 = vmatpush.msra.mxu0 0.0
        %473 = vmatpush.msra.mxu0 %v413
        %474 = vmatpush.msra.mxu0 %v410
        %475 = vmatpush.msra.mxu0 %v407
        %476 = vmatpush.msra.mxu0 %v404
        %477 = vmatmul.f32.gmra.mxu0 %v421
        %v478 = vpop.f32.mrf.mxu0
        %v479 = vadd.f32 0.0, %v478
        %480 = vmatmul.f32.gmra.mxu0 %v424
        %v481 = vpop.f32.mrf.mxu0
        %v482 = vadd.f32 0.0, %v481
        %483 = vmatmul.f32.gmra.mxu0 %v427
        %v484 = vpop.f32.mrf.mxu0
        %v485 = vadd.f32 0.0, %v484
        %486 = vmatmul.f32.gmra.mxu0 %v430
        %v487 = vpop.f32.mrf.mxu0
        %v488 = vadd.f32 0.0, %v487
        %489 = vdwg.mxu0
        %490 = vst [vmem:[%s224] sm:$0xff] %v450
        %491 = vst [vmem:[%s224 + $0x8] sm:$0xff] %v479
        %492 = vst [vmem:[%s224 + $0x10] sm:$0xff] %v453
        %493 = vst [vmem:[%s224 + $0x18] sm:$0xff] %v482
        %494 = vst [vmem:[%s224 + $0x20] sm:$0xff] %v456
        %495 = vst [vmem:[%s224 + $0x28] sm:$0xff] %v485
        %496 = vst [vmem:[%s224 + $0x30] sm:$0xff] %v459
        %497 = vst [vmem:[%s224 + $0x38] sm:$0xff] %v488
        %s498 = sand.u32 %s97, 1
        %s499 = scalar_lea.sflag [#allocation4], %s498
        %s500 = sand.u32 %s97, 1
        %s501 = smul.addr %s500, 64
        %s502 = scalar_lea.vmem [#allocation8], %s501
        // Predicated region
        $region45: #{tpu_custom_call.1} parent=31 // pred_check
          %p503 = pneg %p107
        $region46: #{tpu_custom_call.1} parent=31 // pred_check_branch
          %505 = sbr.rel (%p503) target = $region48
        $region47: #{tpu_custom_call.1} parent=31 // pred_region
          %s506 = smul.u32 2, %s21
          %508 = vsyncadd %s499, 0
          %s509 = smul.addr %s506, 4
          %s510 = smul.addr %s509, 8
          %s511 = scalar_lea.hbm %s3, %s510
          %s512 = sshll.u32 %s502, 4
          %s513 = int_to_ptr.vmem [resolvable:$true] %s512
          %s514 = sshll.u32 %s511, 4
          %s515 = int_to_ptr.hbm [resolvable:$true] %s514
          %520 = dma.vmem_to_hbm [thread:$0]  %s513, 1024, %s515, %s499, 256, 256, 16
        $region48: #{tpu_custom_call.1} parent=31 // pred_fallthru
          _
      $region32: #{tpu_custom_call.1} parent=5 // pred_fallthru
        _
      %p521 = scmp.le.s32.totalorder 2, %s16
      // Predicated region
      $region49: #{tpu_custom_call.1} parent=5 // pred_check
        %p522 = pneg %p521
      $region50: #{tpu_custom_call.1} parent=5 // pred_check_branch
        %524 = sbr.rel (%p522) target = $region52
      $region51: #{tpu_custom_call.1} parent=5 // pred_region
        %s525 = ssub.s32 %s16, 2
        // Predicated region
        $region53: #{tpu_custom_call.1} parent=51 // pred_check
          %p526 = pneg %p113
        $region54: #{tpu_custom_call.1} parent=51 // pred_check_branch
          %528 = sbr.rel (%p526) target = $region56
        $region55: #{tpu_custom_call.1} parent=51 // pred_region
          %s529 = sand.u32 %s98, 1
          %s530 = scalar_lea.sflag [#allocation4], %s529
          %s531 = sand.u32 %s98, 1
          %s532 = smul.addr %s531, 64
          %s533 = scalar_lea.vmem [#allocation8], %s532
          %535 = dma.done %s530, 1024
        $region56: #{tpu_custom_call.1} parent=51 // pred_fallthru
          _
      $region52: #{tpu_custom_call.1} parent=5 // pred_fallthru
        _
    $region6: #{tpu_custom_call.1} parent=1 // loop_footer
      %s20 = sadd.s32 1, %s16
    $region7: #{tpu_custom_call.1} parent=1 // loop_footer_branch
      %15 = sbr.rel target = $region3
    $region8: #{tpu_custom_call.1} parent=1 // loop_exit
      _
    %536 = vsyncpa [#allocation3], 1
    %s537 = scalar_lea.sflag [#allocation3], 1
    %538 = vsyncpa %s537, 1
    %539 = vsyncpa [#allocation6], 1
    %540 = vsyncpa [#allocation4], 1
    %s541 = scalar_lea.sflag [#allocation4], 1
    %542 = vsyncpa %s541, 1

</llo_original>
